<compile_context>
chip_gen: v5e
topology: v5e:2x2
jax: 0.10.0
libtpu: 0.0.40
codegen_flags: <defaults>
</compile_context>

<pallas_src>
import functools

import jax
import jax.numpy as jnp
from jax.experimental import pallas as pl
from jax.experimental.pallas import tpu as pltpu


def _round_up(x, m):
    return ((x + m - 1) // m) * m


def _vmem_capacity_bytes():
    try:
        return int(pltpu.get_tpu_info().vmem_capacity_bytes)
    except Exception:
        return 64 * 1024 * 1024      # conservative fallback: v7x per-TensorCore VMEM


def _pick_batch_block(batch, s_p, d2p, itemsize, vmem_bytes):
    """VMEM-aware batch block: biggest bt whose footprint (double-buffered inputs +
    f32 intermediates) fits ~45% of VMEM, while keeping >=4 grid steps (2 pipelined
    steps per v7x TensorCore) whenever the batch allows it."""
    d4p = 2 * d2p
    per_b = 2 * (s_p * d2p * itemsize          # text (double-buffered)
                 + 2 * s_p * s_p * itemsize    # svo + nonsvo
                 + 2 * s_p * 4                 # inverse degrees
                 + d4p * 4)                    # output tile
    per_b += (s_p * d4p * 4                    # h12 f32 accumulator
              + 2 * s_p * d2p * itemsize       # h1/h2 compute-dtype copies
              + 4 * s_p * d2p * 4              # m1/m2, o1/o2 (f32)
              + 4 * s_p * 4)                   # inter & masks
    const = 2 * (d2p * d4p * itemsize + 4 * d2p * 4 + 128)   # weights / biases
    budget = int(vmem_bytes * 0.45) - const
    cap = max(1, budget // max(per_b, 1))
    cap = min(cap, batch)
    if batch >= 4:
        cap = min(cap, batch // 4)   # >=4 grid steps -> 2 per v7x TensorCore
    elif batch >= 2:
        cap = min(cap, batch // 2)   # >=2 grid steps -> one per core
    return max(1, int(cap))


def _intergcn_kernel(text_ref, svo_ref, nonsvo_ref, invdeg_ref,
                     w12_ref, b12_ref, wfc_ref, bfc_ref, out_ref, *, valid_rows):
    bt, s, d2 = text_ref.shape          # (BT, S_pad, D2_pad)
    d4 = 2 * d2
    cdt = text_ref.dtype                # compute dtype (bf16 or f32), pre-cast in wrapper

    t = text_ref[...]                   # (BT, S, D2)
    a1 = svo_ref[...]                   # (BT, S, S)
    a2 = nonsvo_ref[...]

    # --- fused hidden = text @ [W1 | W2]: one MXU pass over the (BT*S, D2) slab -------
    t2 = t.reshape(bt * s, d2)
    h12 = jnp.dot(t2, w12_ref[...], preferred_element_type=jnp.float32)   # (BT*S, 2*D2)
    h1 = h12[:, 0:d2].reshape(bt, s, d2).astype(cdt)    # lane-aligned slices (D2 % 128 == 0)
    h2 = h12[:, d2:d4].reshape(bt, s, d2).astype(cdt)

    # --- adjacency aggregation: batched MXU matmuls with f32 accumulation -------------
    # (bf16 path intentionally feeds bf16 h1/h2 into the MXU; within the 4e-2 tolerance)
    m1 = jnp.einsum('bij,bjd->bid', a1, h1, preferred_element_type=jnp.float32)
    m2 = jnp.einsum('bij,bjd->bid', a2, h2, preferred_element_type=jnp.float32)

    # --- normalization (exact f32 1/(deg+1) precomputed in wrapper), bias, relu -------
    inv = invdeg_ref[...]               # (BT, 2, S) f32
    b12 = b12_ref[...]                  # (2, D2) f32
    o1 = jnp.maximum(m1 * inv[:, 0, :, None] + b12[0][None, None, :], 0.0)   # (BT,S,D2) f32
    o2 = jnp.maximum(m2 * inv[:, 1, :, None] + b12[1][None, None, :], 0.0)

    # --- intermed = fc(concat(o1, o2)): lane-dense fc rows, VPU mul + lane reduce -----
    wfc = wfc_ref[...]                  # (2, D2) f32
    inter = (jnp.sum(o1 * wfc[0][None, None, :], axis=-1)
             + jnp.sum(o2 * wfc[1][None, None, :], axis=-1)
             + bfc_ref[0, 0])                                   # (BT, S) f32

    if valid_rows < s:                  # zero padded seq rows so they don't leak into comp
        row_ok = jax.lax.broadcasted_iota(jnp.int32, (1, s), 1) < valid_rows
        inter = jnp.where(row_ok, inter, 0.0)

    # --- comp = x^T @ intermed, written as one sublane/lane-dense (BT, 4H) tile -------
    iw = inter[:, :, None]              # (BT, S, 1)
    c1 = jnp.sum(o1 * iw, axis=1)       # (BT, D2)
    c2 = jnp.sum(o2 * iw, axis=1)
    out_ref[:, :, 0:d2] = c1[None]      # lane offsets 0 / D2 are multiples of 128
    out_ref[:, :, d2:d4] = c2[None]


def intergcn_pallas(text_out, svo, nonsvo, params, *, use_bf16=True, batch_block=None):
    """GCN1/GCN2 + relu + concat + fc + x^T @ fc(x) in one Pallas kernel -> (B, 1, 4H)."""
    w1, b1, w2, b2, wfc, bfc = params
    B, S, D2 = text_out.shape
    D4 = 2 * D2
    compute_dtype = jnp.bfloat16 if use_bf16 else jnp.float32
    itemsize = 2 if use_bf16 else 4

    # Pad S to a sublane multiple and D2 to a lane (128) multiple: reshapes become free
    # views, MXU tiles are unpadded, and the second-half stores are lane-aligned.
    S_p = _round_up(S, 16 if use_bf16 else 8)
    D2p = _round_up(D2, 128)
    D4p = 2 * D2p

    vmem_cap = _vmem_capacity_bytes()
    bt = (_pick_batch_block(B, S_p, D2p, itemsize, vmem_cap)
          if batch_block is None else batch_block)
    B_p = _round_up(B, bt)              # pad the batch instead of asserting divisibility
    nb = B_p // bt

    # --- wrapper-side prep: pad, pre-cast matmul operands (adjacency is 0/1 -> exact in
    # bf16), precompute exact f32 1/(deg+1), fuse W1|W2 into one matrix -----------------
    text_p = jnp.zeros((B_p, S_p, D2p), compute_dtype)
    text_p = text_p.at[:B, :S, :D2].set(text_out.astype(compute_dtype))
    svo_p = jnp.zeros((B_p, S_p, S_p), compute_dtype).at[:B, :S, :S].set(
        svo.astype(compute_dtype))
    nonsvo_p = jnp.zeros((B_p, S_p, S_p), compute_dtype).at[:B, :S, :S].set(
        nonsvo.astype(compute_dtype))

    invdeg = jnp.zeros((B_p, 2, S_p), jnp.float32)
    invdeg = invdeg.at[:B, 0, :S].set(1.0 / (jnp.sum(svo, axis=2) + 1.0))
    invdeg = invdeg.at[:B, 1, :S].set(1.0 / (jnp.sum(nonsvo, axis=2) + 1.0))

    w12 = jnp.zeros((D2p, D4p), jnp.float32)
    w12 = w12.at[:D2, :D2].set(w1).at[:D2, D2p:D2p + D2].set(w2)
    w12 = w12.astype(compute_dtype)

    b12 = jnp.zeros((2, D2p), jnp.float32).at[0, :D2].set(b1[0]).at[1, :D2].set(b2[0])
    wfc_rows = jnp.zeros((2, D2p), jnp.float32)
    wfc_rows = wfc_rows.at[0, :D2].set(wfc[:D2, 0]).at[1, :D2].set(wfc[D2:, 0])
    bfc_s = bfc.reshape(1, 1).astype(jnp.float32)

    kernel = functools.partial(_intergcn_kernel, valid_rows=S)

    flops = int(B_p * (2 * S_p * D2p * D4p        # fused text @ [W1|W2]
                       + 4 * S_p * S_p * D2p      # two adjacency matmuls
                       + 2 * S_p * D4p            # fc over the concat
                       + 2 * S_p * D4p))          # x^T @ intermed
    bytes_accessed = int(B_p * (S_p * D2p * itemsize + 2 * S_p * S_p * itemsize
                                + 2 * S_p * 4 + D4p * 4)
                         + D2p * D4p * itemsize + 4 * D2p * 4 + 4)
    cost = pl.CostEstimate(flops=flops, transcendentals=0, bytes_accessed=bytes_accessed)

    # 75% of the chip's VMEM (≈48 MiB on v7x, ≈96 MiB on v5e/v6e), never the full cap.
    vmem_limit = min(int(vmem_cap * 3 // 4), 112 * 1024 * 1024)

    out = pl.pallas_call(
        kernel,
        out_shape=jax.ShapeDtypeStruct((nb, bt, D4p), jnp.float32),
        grid_spec=pltpu.PrefetchScalarGridSpec(
            num_scalar_prefetch=0,
            grid=(nb,),
            in_specs=[
                pl.BlockSpec((bt, S_p, D2p), lambda b: (b, 0, 0)),   # text (compute dtype)
                pl.BlockSpec((bt, S_p, S_p), lambda b: (b, 0, 0)),   # svo
                pl.BlockSpec((bt, S_p, S_p), lambda b: (b, 0, 0)),   # nonsvo
                pl.BlockSpec((bt, 2, S_p), lambda b: (b, 0, 0)),     # 1/(deg+1), f32
                pl.BlockSpec((D2p, D4p), lambda b: (0, 0)),          # [W1 | W2]
                pl.BlockSpec((2, D2p), lambda b: (0, 0)),            # [b1 ; b2]
                pl.BlockSpec((2, D2p), lambda b: (0, 0)),            # fc weight rows
                pl.BlockSpec(memory_space=pltpu.MemorySpace.SMEM),   # fc bias scalar
            ],
            out_specs=pl.BlockSpec((1, bt, D4p), lambda b: (b, 0, 0)),
        ),
        compiler_params=pltpu.CompilerParams(
            dimension_semantics=("parallel",),    # batch steps shard across v7x's 2 TCs
            vmem_limit_bytes=vmem_limit),
        cost_estimate=cost,
    )(text_p, svo_p, nonsvo_p, invdeg, w12, b12, wfc_rows, bfc_s)

    # (nb, bt, D4p) -> (B, 1, D4): drop batch padding and the lane padding of each half.
    out = out.reshape(B_p, D4p)
    comp = jnp.concatenate([out[:B, :D2], out[:B, D2p:D2p + D2]], axis=1)
    return comp.reshape(B, 1, D4)


def intergcn_reference(text_out, svo, nonsvo, params):
    """Pure-JAX f32 reference mirroring the torch forward exactly."""
    w1, b1, w2, b2, wfc, bfc = params

    def gcn(t, adj, w, b):
        hidden = jnp.matmul(t, w)
        denom = jnp.sum(adj, axis=2, keepdims=True) + 1.0
        return jnp.matmul(adj, hidden) / denom + b

    x1 = jax.nn.relu(gcn(text_out, svo, w1, b1[0]))
    x2 = jax.nn.relu(gcn(text_out, nonsvo, w2, b2[0]))
    x = jnp.concatenate([x1, x2], axis=2)                      # (B, S, 4H)
    intermed = jnp.matmul(x, wfc) + bfc[0]                     # (B, S, 1)
    comp = jnp.matmul(jnp.transpose(x, (0, 2, 1)), intermed)   # (B, 4H, 1)
    return jnp.transpose(comp, (0, 2, 1))                      # (B, 1, 4H)


if __name__ == "__main__":
    # --- small deterministic setup ---
    B, S, H = 4, 8, 16          # batch, seq_len, hidden_size
    D2, D4 = 2 * H, 4 * H
    VOCAB, EMB = 50, 24

    key = jax.random.PRNGKey(0)
    keys = jax.random.split(key, 12)

    # "pretrained" embedding matrix + module parameters (deterministic randn-style init)
    embedding_matrix = jax.random.normal(keys[0], (VOCAB, EMB), jnp.float32)
    w1 = jax.random.normal(keys[1], (D2, D2), jnp.float32)
    b1 = jax.random.normal(keys[2], (1, D2), jnp.float32)
    w2 = jax.random.normal(keys[3], (D2, D2), jnp.float32)
    b2 = jax.random.normal(keys[4], (1, D2), jnp.float32)
    wfc = jax.random.normal(keys[5], (D4, 1), jnp.float32) * 0.1   # nn.Linear(4H, 1)
    bfc = jax.random.normal(keys[6], (1, 1), jnp.float32) * 0.1
    params = (w1, b1, w2, b2, wfc, bfc)

    # external-encoder stub parameters (encoder is an argument to forward, not a submodule)
    w_enc = jax.random.normal(keys[7], (EMB, D2), jnp.float32) * 0.2
    b_enc = jax.random.normal(keys[8], (1, 1, D2), jnp.float32) * 0.2

    # --- inputs: (text_indices, svo, nonsvo) ---
    text_indices = jax.random.randint(keys[9], (B, S), 1, VOCAB, jnp.int32)
    svo = (jax.random.uniform(keys[10], (B, S, S)) > 0.5).astype(jnp.float32)
    nonsvo = (jax.random.uniform(keys[11], (B, S, S)) > 0.5).astype(jnp.float32)

    # --- glue: embedding lookup, dropout (eval-mode identity), encoder stub ---
    text_len = jnp.sum(text_indices != 0, axis=-1)             # computed as in forward
    text = embedding_matrix[text_indices]                      # nn.Embedding lookup
    text = text                                                # Dropout(0.3) eval mode == identity
    # TODO(synk): `encoder` is passed into forward from outside INTERGCN; stubbed here as a
    # deterministic linear+tanh projection producing text_out of shape (B, S, 2H).
    text_out = jnp.tanh(jnp.matmul(text, w_enc) + b_enc)       # (B, S, 2H)

    ref = intergcn_reference(text_out, svo, nonsvo, params)

    # f32 path: must match the reference tightly (validates kernel structure / padding).
    out_f32 = jax.block_until_ready(
        intergcn_pallas(text_out, svo, nonsvo, params, use_bf16=False))
    assert out_f32.shape == (B, 1, D4)
    assert jnp.allclose(out_f32, ref, rtol=1e-5, atol=1e-4), "f32 kernel mismatch vs reference"

    # bf16 path (default / fast): bf16 MXU operands with f32 accumulation.
    out_bf16 = jax.block_until_ready(
        intergcn_pallas(text_out, svo, nonsvo, params, use_bf16=True))
    assert out_bf16.shape == (B, 1, D4)
    rel_err = jnp.max(jnp.abs(out_bf16 - ref)) / (jnp.max(jnp.abs(ref)) + 1e-6)
    assert rel_err < 4e-2, f"bf16 kernel error too large: {rel_err}"

    print("KERNEL_OK")
</pallas_src>

<mosaic_0001>
module attributes {stable_mosaic.version = 11 : i64} {
  func.func @_intergcn_kernel(%arg0: i32, %arg1: memref<1x8x128xf32, #tpu.memory_space<vmem>>, %arg2: memref<1x8x8xf32, #tpu.memory_space<vmem>>, %arg3: memref<1x8x8xf32, #tpu.memory_space<vmem>>, %arg4: memref<1x2x8xf32, #tpu.memory_space<vmem>>, %arg5: memref<128x256xf32, #tpu.memory_space<vmem>>, %arg6: memref<2x128xf32, #tpu.memory_space<vmem>>, %arg7: memref<2x128xf32, #tpu.memory_space<vmem>>, %arg8: memref<1x1xf32, #tpu.memory_space<smem>>, %arg9: memref<1x1x256xf32, #tpu.memory_space<vmem>>) attributes {dimension_semantics = [#tpu.dimension_semantics<parallel>], iteration_bounds = array<i64: 4>, scalar_prefetch = 0 : i64, scratch_operands = 0 : i64, tpu.core_type = #tpu.core_type<tc>, window_params = [{transform_indices = @transform_0, window_bounds = array<i64: 1, 8, 128>}, {transform_indices = @transform_1, window_bounds = array<i64: 1, 8, 8>}, {transform_indices = @transform_2, window_bounds = array<i64: 1, 8, 8>}, {transform_indices = @transform_3, window_bounds = array<i64: 1, 2, 8>}, {pipeline_mode = #tpu.pipeline_mode<synchronous>, transform_indices = @transform_4, window_bounds = array<i64: 128, 256>}, {pipeline_mode = #tpu.pipeline_mode<synchronous>, transform_indices = @transform_5, window_bounds = array<i64: 2, 128>}, {pipeline_mode = #tpu.pipeline_mode<synchronous>, transform_indices = @transform_6, window_bounds = array<i64: 2, 128>}, {transform_indices = @transform_7, window_bounds = array<i64: 1, 1>}, {transform_indices = @transform_8, window_bounds = array<i64: 1, 1, 256>}]} {
    %c0 = arith.constant 0 : index
    %c0_0 = arith.constant 0 : index
    %c0_1 = arith.constant 0 : index
    %0 = vector.load %arg1[%c0, %c0_0, %c0_1] : memref<1x8x128xf32, #tpu.memory_space<vmem>>, vector<1x8x128xf32>
    %c0_2 = arith.constant 0 : index
    %c0_3 = arith.constant 0 : index
    %c0_4 = arith.constant 0 : index
    %1 = vector.load %arg2[%c0_2, %c0_3, %c0_4] : memref<1x8x8xf32, #tpu.memory_space<vmem>>, vector<1x8x8xf32>
    %c0_5 = arith.constant 0 : index
    %c0_6 = arith.constant 0 : index
    %c0_7 = arith.constant 0 : index
    %2 = vector.load %arg3[%c0_5, %c0_6, %c0_7] : memref<1x8x8xf32, #tpu.memory_space<vmem>>, vector<1x8x8xf32>
    %3 = vector.shape_cast %0 : vector<1x8x128xf32> to vector<8x128xf32>
    %c0_8 = arith.constant 0 : index
    %c0_9 = arith.constant 0 : index
    %4 = vector.load %arg5[%c0_8, %c0_9] : memref<128x256xf32, #tpu.memory_space<vmem>>, vector<128x256xf32>
    %cst = arith.constant dense<0.000000e+00> : vector<8x256xf32>
    %5 = tpu.matmul %3, %4, %cst {dimension_numbers = #tpu.dot_dimension_numbers<[1], [0], [0], [1], [0, 0, 1, 1], [], []>} : vector<8x128xf32>, vector<128x256xf32>, vector<8x256xf32> -> vector<8x256xf32>
    %6 = vector.extract_strided_slice %5 {offsets = [0, 0], sizes = [8, 128], strides = [1, 1]} : vector<8x256xf32> to vector<8x128xf32>
    %7 = vector.shape_cast %6 : vector<8x128xf32> to vector<1x8x128xf32>
    %8 = vector.extract_strided_slice %5 {offsets = [0, 128], sizes = [8, 128], strides = [1, 1]} : vector<8x256xf32> to vector<8x128xf32>
    %9 = vector.shape_cast %8 : vector<8x128xf32> to vector<1x8x128xf32>
    "tpu.trace_start"() <{level = 10 : i32, message = "bij,bjd->bid"}> : () -> ()
    %cst_10 = arith.constant dense<0.000000e+00> : vector<1x8x128xf32>
    %10 = tpu.matmul %1, %7, %cst_10 {dimension_numbers = #tpu.dot_dimension_numbers<[2], [1], [1], [2], [0, 0, 0, 1, 1, 2], [0], [0]>} : vector<1x8x8xf32>, vector<1x8x128xf32>, vector<1x8x128xf32> -> vector<1x8x128xf32>
    %cst_11 = arith.constant dense<0.000000e+00> : vector<1x8x128xf32>
    %11 = tpu.matmul %2, %9, %cst_11 {dimension_numbers = #tpu.dot_dimension_numbers<[2], [1], [1], [2], [0, 0, 0, 1, 1, 2], [0], [0]>} : vector<1x8x8xf32>, vector<1x8x128xf32>, vector<1x8x128xf32> -> vector<1x8x128xf32>
    "tpu.trace_stop"() : () -> ()
    %c0_12 = arith.constant 0 : index
    %c0_13 = arith.constant 0 : index
    %c0_14 = arith.constant 0 : index
    %12 = vector.load %arg4[%c0_12, %c0_13, %c0_14] : memref<1x2x8xf32, #tpu.memory_space<vmem>>, vector<1x2x8xf32>
    %c0_15 = arith.constant 0 : index
    %c0_16 = arith.constant 0 : index
    %13 = vector.load %arg6[%c0_15, %c0_16] : memref<2x128xf32, #tpu.memory_space<vmem>>, vector<2x128xf32>
    %14 = vector.extract_strided_slice %12 {offsets = [0, 0, 0], sizes = [1, 1, 8], strides = [1, 1, 1]} : vector<1x2x8xf32> to vector<1x1x8xf32>
    %15 = vector.shape_cast %14 : vector<1x1x8xf32> to vector<1x8xf32>
    %16 = vector.shape_cast %15 : vector<1x8xf32> to vector<1x8x1xf32>
    %17 = vector.broadcast %16 : vector<1x8x1xf32> to vector<1x8x128xf32>
    %18 = arith.mulf %10, %17 : vector<1x8x128xf32>
    %19 = vector.extract_strided_slice %13 {offsets = [0, 0], sizes = [1, 128], strides = [1, 1]} : vector<2x128xf32> to vector<1x128xf32>
    %20 = vector.shape_cast %19 : vector<1x128xf32> to vector<128xf32>
    %21 = vector.shape_cast %20 : vector<128xf32> to vector<1x1x128xf32>
    %22 = vector.broadcast %21 : vector<1x1x128xf32> to vector<1x8x128xf32>
    %23 = arith.addf %18, %22 : vector<1x8x128xf32>
    %cst_17 = arith.constant 0.000000e+00 : f32
    %24 = vector.broadcast %cst_17 : f32 to vector<1x8x128xf32>
    %25 = arith.maximumf %23, %24 : vector<1x8x128xf32>
    %26 = vector.extract_strided_slice %12 {offsets = [0, 1, 0], sizes = [1, 1, 8], strides = [1, 1, 1]} : vector<1x2x8xf32> to vector<1x1x8xf32>
    %27 = vector.shape_cast %26 : vector<1x1x8xf32> to vector<1x8xf32>
    %28 = vector.shape_cast %27 : vector<1x8xf32> to vector<1x8x1xf32>
    %29 = vector.broadcast %28 : vector<1x8x1xf32> to vector<1x8x128xf32>
    %30 = arith.mulf %11, %29 : vector<1x8x128xf32>
    %31 = vector.extract_strided_slice %13 {offsets = [1, 0], sizes = [1, 128], strides = [1, 1]} : vector<2x128xf32> to vector<1x128xf32>
    %32 = vector.shape_cast %31 : vector<1x128xf32> to vector<128xf32>
    %33 = vector.shape_cast %32 : vector<128xf32> to vector<1x1x128xf32>
    %34 = vector.broadcast %33 : vector<1x1x128xf32> to vector<1x8x128xf32>
    %35 = arith.addf %30, %34 : vector<1x8x128xf32>
    %cst_18 = arith.constant 0.000000e+00 : f32
    %36 = vector.broadcast %cst_18 : f32 to vector<1x8x128xf32>
    %37 = arith.maximumf %35, %36 : vector<1x8x128xf32>
    %c0_19 = arith.constant 0 : index
    %c0_20 = arith.constant 0 : index
    %38 = vector.load %arg7[%c0_19, %c0_20] : memref<2x128xf32, #tpu.memory_space<vmem>>, vector<2x128xf32>
    %39 = vector.extract_strided_slice %38 {offsets = [0, 0], sizes = [1, 128], strides = [1, 1]} : vector<2x128xf32> to vector<1x128xf32>
    %40 = vector.shape_cast %39 : vector<1x128xf32> to vector<128xf32>
    %41 = vector.shape_cast %40 : vector<128xf32> to vector<1x1x128xf32>
    %42 = vector.broadcast %41 : vector<1x1x128xf32> to vector<1x8x128xf32>
    %43 = arith.mulf %25, %42 : vector<1x8x128xf32>
    %cst_21 = arith.constant dense<0.000000e+00> : vector<1x8xf32>
    %44 = vector.multi_reduction <add>, %43, %cst_21 [2] : vector<1x8x128xf32> to vector<1x8xf32>
    %45 = vector.extract_strided_slice %38 {offsets = [1, 0], sizes = [1, 128], strides = [1, 1]} : vector<2x128xf32> to vector<1x128xf32>
    %46 = vector.shape_cast %45 : vector<1x128xf32> to vector<128xf32>
    %47 = vector.shape_cast %46 : vector<128xf32> to vector<1x1x128xf32>
    %48 = vector.broadcast %47 : vector<1x1x128xf32> to vector<1x8x128xf32>
    %49 = arith.mulf %37, %48 : vector<1x8x128xf32>
    %cst_22 = arith.constant dense<0.000000e+00> : vector<1x8xf32>
    %50 = vector.multi_reduction <add>, %49, %cst_22 [2] : vector<1x8x128xf32> to vector<1x8xf32>
    %51 = arith.addf %44, %50 : vector<1x8xf32>
    %c0_23 = arith.constant 0 : index
    %c0_24 = arith.constant 0 : index
    %52 = memref.load %arg8[%c0_23, %c0_24] : memref<1x1xf32, #tpu.memory_space<smem>>
    %53 = vector.broadcast %52 : f32 to vector<1x8xf32>
    %54 = arith.addf %51, %53 : vector<1x8xf32>
    %55 = vector.shape_cast %54 : vector<1x8xf32> to vector<1x8x1xf32>
    %56 = vector.broadcast %55 : vector<1x8x1xf32> to vector<1x8x128xf32>
    %57 = arith.mulf %25, %56 : vector<1x8x128xf32>
    %cst_25 = arith.constant dense<0.000000e+00> : vector<1x128xf32>
    %58 = vector.multi_reduction <add>, %57, %cst_25 [1] : vector<1x8x128xf32> to vector<1x128xf32>
    %59 = vector.broadcast %55 : vector<1x8x1xf32> to vector<1x8x128xf32>
    %60 = arith.mulf %37, %59 : vector<1x8x128xf32>
    %cst_26 = arith.constant dense<0.000000e+00> : vector<1x128xf32>
    %61 = vector.multi_reduction <add>, %60, %cst_26 [1] : vector<1x8x128xf32> to vector<1x128xf32>
    %62 = vector.shape_cast %58 : vector<1x128xf32> to vector<1x1x128xf32>
    %c0_27 = arith.constant 0 : index
    %c0_28 = arith.constant 0 : index
    %c0_29 = arith.constant 0 : index
    %63 = vector.load %arg9[%c0_27, %c0_28, %c0_29] : memref<1x1x256xf32, #tpu.memory_space<vmem>>, vector<1x1x128xf32>
    tpu.vector_store %arg9[%c0_27, %c0_28, %c0_29], %62 {strides = array<i32>} : memref<1x1x256xf32, #tpu.memory_space<vmem>>, vector<1x1x128xf32>,
    %64 = vector.shape_cast %61 : vector<1x128xf32> to vector<1x1x128xf32>
    %c0_30 = arith.constant 0 : index
    %c0_31 = arith.constant 0 : index
    %c128 = arith.constant 128 : index
    %65 = vector.load %arg9[%c0_30, %c0_31, %c128] : memref<1x1x256xf32, #tpu.memory_space<vmem>>, vector<1x1x128xf32>
    tpu.vector_store %arg9[%c0_30, %c0_31, %c128], %64 {strides = array<i32>} : memref<1x1x256xf32, #tpu.memory_space<vmem>>, vector<1x1x128xf32>,
    return
  }
  func.func @transform_0(%arg0: i32) -> (i32, i32, i32) {
    %c0_i32 = arith.constant 0 : i32
    %c0_i32_0 = arith.constant 0 : i32
    %c0_i32_1 = arith.constant 0 : i32
    return %arg0, %c0_i32, %c0_i32_0 : i32, i32, i32
  }
  func.func @transform_1(%arg0: i32) -> (i32, i32, i32) {
    %c0_i32 = arith.constant 0 : i32
    %c0_i32_0 = arith.constant 0 : i32
    %c0_i32_1 = arith.constant 0 : i32
    return %arg0, %c0_i32, %c0_i32_0 : i32, i32, i32
  }
  func.func @transform_2(%arg0: i32) -> (i32, i32, i32) {
    %c0_i32 = arith.constant 0 : i32
    %c0_i32_0 = arith.constant 0 : i32
    %c0_i32_1 = arith.constant 0 : i32
    return %arg0, %c0_i32, %c0_i32_0 : i32, i32, i32
  }
  func.func @transform_3(%arg0: i32) -> (i32, i32, i32) {
    %c0_i32 = arith.constant 0 : i32
    %c0_i32_0 = arith.constant 0 : i32
    %c0_i32_1 = arith.constant 0 : i32
    return %arg0, %c0_i32, %c0_i32_0 : i32, i32, i32
  }
  func.func @transform_4(%arg0: i32) -> (i32, i32) {
    %c0_i32 = arith.constant 0 : i32
    %c0_i32_0 = arith.constant 0 : i32
    %c0_i32_1 = arith.constant 0 : i32
    return %c0_i32, %c0_i32_0 : i32, i32
  }
  func.func @transform_5(%arg0: i32) -> (i32, i32) {
    %c0_i32 = arith.constant 0 : i32
    %c0_i32_0 = arith.constant 0 : i32
    %c0_i32_1 = arith.constant 0 : i32
    return %c0_i32, %c0_i32_0 : i32, i32
  }
  func.func @transform_6(%arg0: i32) -> (i32, i32) {
    %c0_i32 = arith.constant 0 : i32
    %c0_i32_0 = arith.constant 0 : i32
    %c0_i32_1 = arith.constant 0 : i32
    return %c0_i32, %c0_i32_0 : i32, i32
  }
  func.func @transform_7(%arg0: i32) -> (i32, i32) {
    %c0_i32 = arith.constant 0 : i32
    %c0_i32_0 = arith.constant 0 : i32
    %c0_i32_1 = arith.constant 0 : i32
    return %c0_i32, %c0_i32_0 : i32, i32
  }
  func.func @transform_8(%arg0: i32) -> (i32, i32, i32) {
    %c0_i32 = arith.constant 0 : i32
    %c0_i32_0 = arith.constant 0 : i32
    %c0_i32_1 = arith.constant 0 : i32
    return %arg0, %c0_i32, %c0_i32_0 : i32, i32, i32
  }
}

</mosaic_0001>

<llo_original>
// kernel: tpu_custom_call.1
$region0: #{tpu_custom_call.1}
  #allocation0 [shape = 'u32[]', space=smem, size = 0x4, offset = 0x4, fixed_abs, tag = 'smem constant byte address 0x4 - core index']
  #allocation1 [shape = 'u32[72,128]{1,0:T(1,128)}', space=vmem, size = 0x9000, scoped, tag = 'internal scratch']
  #allocation2 [shape = 'f32[1,1]{1,0:T(1,128)S(6)}', space=smem, size = 0x200, scoped, tag = 'scoped memory for tpu_custom_call.1']
  %s0 = inlined_call_operand.hbm [shape: f32[4,8,128], index: 0, kind: input, shape index: {}]
  %s1 = inlined_call_operand.hbm [shape: f32[4,8,8], index: 1, kind: input, shape index: {}]
  %s2 = inlined_call_operand.hbm [shape: f32[4,8,8], index: 2, kind: input, shape index: {}]
  %s3 = inlined_call_operand.hbm [shape: f32[4,2,8], index: 3, kind: input, shape index: {}]
  %s4 = inlined_call_operand.hbm [shape: f32[128,256], index: 4, kind: input, shape index: {}]
  %s5 = inlined_call_operand.vmem [shape: f32[2,128], index: 5, kind: input, shape index: {}]
  %s6 = inlined_call_operand.vmem [shape: f32[2,128], index: 6, kind: input, shape index: {}]
  %s7 = inlined_call_operand.<no memory space> [shape: f32[1,1], index: 7, kind: input, shape index: {}]
  %s8 = inlined_call_operand.hbm [shape: f32[4,1,256], index: 8, kind: output, shape index: {}]
  %s9 = sld [smem:[#allocation0]]
  $region85: #{tpu_custom_call.1} parent=0
    _
  %s11 = ssub.s32 1, %s9
  %s12 = scalar_select 0, %s11, %s9
  %13 = sst [smem:[#allocation2]] %s7
  $region1: #{tpu_custom_call.1} parent=0
    #allocation3 [shape = 'u8[8192]{0}', space=vmem, size = 0x2000, scoped, tag = 'input window, operand 0']
    #allocation4 [shape = 's32[2]{0}', space=sflag, size = 0x8, scoped, tag = 'scoped memory for tpu_custom_call.1']
    #allocation5 [shape = 's32[2]{0}', space=sflag, size = 0x8, scoped, tag = 'scoped memory for tpu_custom_call.1']
    #allocation6 [shape = 'u8[8192]{0}', space=vmem, size = 0x2000, scoped, tag = 'input window, operand 1']
    #allocation7 [shape = 's32[2]{0}', space=sflag, size = 0x8, scoped, tag = 'scoped memory for tpu_custom_call.1']
    #allocation8 [shape = 'u8[8192]{0}', space=vmem, size = 0x2000, scoped, tag = 'input window, operand 2']
    #allocation9 [shape = 'u8[2048]{0}', space=vmem, size = 0x800, scoped, tag = 'input window, operand 3']
    #allocation10 [shape = 's32[2]{0}', space=sflag, size = 0x8, scoped, tag = 'scoped memory for tpu_custom_call.1']
    #allocation11 [shape = 'u8[131072]{0}', space=vmem, size = 0x20000, scoped, tag = 'input window, operand 4, single buffered']
    #allocation12 [shape = 'u8[2048]{0}', space=vmem, size = 0x800, scoped, tag = 'output window, operand 0']
    %14 = vsyncpa [#allocation4], 0
    %s15 = scalar_lea.sflag [#allocation4], 1
    %16 = vsyncpa %s15, 0
    %17 = vsyncpa [#allocation7], 0
    %s18 = scalar_lea.sflag [#allocation7], 1
    %19 = vsyncpa %s18, 0
    %20 = vsyncpa [#allocation10], 0
    %s21 = scalar_lea.sflag [#allocation10], 1
    %22 = vsyncpa %s21, 0
    %23 = vsyncpa [#allocation5], 0
    %s24 = scalar_lea.sflag [#allocation5], 1
    %25 = vsyncpa %s24, 0
    loop: start=0, step=1, limit=6
    $region2: #{tpu_custom_call.1} parent=1 // loop_pre_header
      _
    $region3: #{tpu_custom_call.1} parent=1 // loop_header
      %s27 = sphi 0, %s31
      %p28 = scmp.ge.s32.totalorder %s27, 6
      %s37 = sphi 0, %s39
      %s40 = sphi 0, %s37
      %s41 = sphi 0, %s40
      %s57 = sphi 0, %s41
      %s63 = sphi 0, %s65
      %s66 = sphi 0, %s63
      %s67 = sphi 0, %s66
      %s83 = sphi 0, %s67
      %s89 = sphi 0, %s91
      %s92 = sphi 0, %s89
      %s93 = sphi 0, %s92
      %s109 = sphi 0, %s93
      %s115 = sphi 0, %s117
      %s118 = sphi 0, %s115
      %s119 = sphi 0, %s118
      %s135 = sphi 0, %s119
      %s139 = sphi 0, %s139
      %s141 = sphi 0, %s139
      %s142 = sphi 0, %s141
      %s156 = sphi 0, %s142
      %s160 = sphi 0, %s160
      %s162 = sphi 0, %s160
      %s163 = sphi 0, %s162
      %s177 = sphi 0, %s163
      %s181 = sphi 0, %s181
      %s183 = sphi 0, %s181
      %s184 = sphi 0, %s183
      %s198 = sphi 0, %s184
      %s202 = sphi 0, %s202
      %s204 = sphi 0, %s202
      %s205 = sphi 0, %s204
      %s219 = sphi 0, %s205
      %s225 = sphi 0, %s227
      %s228 = sphi 0, %s225
      %s229 = sphi 0, %s228
      %s245 = sphi 0, %s229
    $region4: #{tpu_custom_call.1} parent=1 // loop_header_branch
      %30 = sbr.rel (%p28) target = $region8
    $region5: #{tpu_custom_call.1} parent=1 // loop_body
      %s32 = ssub.s32 %s27, 1
      %s33 = ssub.s32 %s27, 2
      %s34 = sadd.s32 %s27, 1
      %s35 = ssub.s32 %s27, %s34
      %p36 = scmp.eq.s32.totalorder %s35, 0
      %s38 = sadd.s32 %s37, 1
      %s39 = scalar_select %p36, %s37, %s38
      %p42 = pneg %p36
      %p43 = scmp.eq.s32.totalorder %s27, 3
      %p44 = por %p42, %p43
      %p45 = scmp.ne.s32.totalorder %s37, %s40
      %p46 = scmp.eq.s32.totalorder %s27, 0
      %p47 = por %p45, %p46
      %p48 = scmp.ne.s32.totalorder %s37, %s40
      %p49 = scmp.eq.s32.totalorder %s32, 3
      %p50 = por %p48, %p49
      %p51 = scmp.ne.s32.totalorder %s40, %s41
      %p52 = scmp.eq.s32.totalorder %s32, 0
      %p53 = por %p51, %p52
      %p54 = scmp.ne.s32.totalorder %s40, %s41
      %p55 = scmp.eq.s32.totalorder %s33, 3
      %p56 = por %p54, %p55
      %p58 = scmp.ne.s32.totalorder %s41, %s57
      %p59 = scmp.eq.s32.totalorder %s33, 0
      %p60 = por %p58, %p59
      %s61 = ssub.s32 %s27, %s34
      %p62 = scmp.eq.s32.totalorder %s61, 0
      %s64 = sadd.s32 %s63, 1
      %s65 = scalar_select %p62, %s63, %s64
      %p68 = pneg %p62
      %p69 = scmp.eq.s32.totalorder %s27, 3
      %p70 = por %p68, %p69
      %p71 = scmp.ne.s32.totalorder %s63, %s66
      %p72 = scmp.eq.s32.totalorder %s27, 0
      %p73 = por %p71, %p72
      %p74 = scmp.ne.s32.totalorder %s63, %s66
      %p75 = scmp.eq.s32.totalorder %s32, 3
      %p76 = por %p74, %p75
      %p77 = scmp.ne.s32.totalorder %s66, %s67
      %p78 = scmp.eq.s32.totalorder %s32, 0
      %p79 = por %p77, %p78
      %p80 = scmp.ne.s32.totalorder %s66, %s67
      %p81 = scmp.eq.s32.totalorder %s33, 3
      %p82 = por %p80, %p81
      %p84 = scmp.ne.s32.totalorder %s67, %s83
      %p85 = scmp.eq.s32.totalorder %s33, 0
      %p86 = por %p84, %p85
      %s87 = ssub.s32 %s27, %s34
      %p88 = scmp.eq.s32.totalorder %s87, 0
      %s90 = sadd.s32 %s89, 1
      %s91 = scalar_select %p88, %s89, %s90
      %p94 = pneg %p88
      %p95 = scmp.eq.s32.totalorder %s27, 3
      %p96 = por %p94, %p95
      %p97 = scmp.ne.s32.totalorder %s89, %s92
      %p98 = scmp.eq.s32.totalorder %s27, 0
      %p99 = por %p97, %p98
      %p100 = scmp.ne.s32.totalorder %s89, %s92
      %p101 = scmp.eq.s32.totalorder %s32, 3
      %p102 = por %p100, %p101
      %p103 = scmp.ne.s32.totalorder %s92, %s93
      %p104 = scmp.eq.s32.totalorder %s32, 0
      %p105 = por %p103, %p104
      %p106 = scmp.ne.s32.totalorder %s92, %s93
      %p107 = scmp.eq.s32.totalorder %s33, 3
      %p108 = por %p106, %p107
      %p110 = scmp.ne.s32.totalorder %s93, %s109
      %p111 = scmp.eq.s32.totalorder %s33, 0
      %p112 = por %p110, %p111
      %s113 = ssub.s32 %s27, %s34
      %p114 = scmp.eq.s32.totalorder %s113, 0
      %s116 = sadd.s32 %s115, 1
      %s117 = scalar_select %p114, %s115, %s116
      %p120 = pneg %p114
      %p121 = scmp.eq.s32.totalorder %s27, 3
      %p122 = por %p120, %p121
      %p123 = scmp.ne.s32.totalorder %s115, %s118
      %p124 = scmp.eq.s32.totalorder %s27, 0
      %p125 = por %p123, %p124
      %p126 = scmp.ne.s32.totalorder %s115, %s118
      %p127 = scmp.eq.s32.totalorder %s32, 3
      %p128 = por %p126, %p127
      %p129 = scmp.ne.s32.totalorder %s118, %s119
      %p130 = scmp.eq.s32.totalorder %s32, 0
      %p131 = por %p129, %p130
      %p132 = scmp.ne.s32.totalorder %s118, %s119
      %p133 = scmp.eq.s32.totalorder %s33, 3
      %p134 = por %p132, %p133
      %p136 = scmp.ne.s32.totalorder %s119, %s135
      %p137 = scmp.eq.s32.totalorder %s33, 0
      %p138 = por %p136, %p137
      %s140 = sadd.s32 %s139, 1
      %p143 = scmp.eq.s32.totalorder %s27, 3
      %p144 = scmp.ne.s32.totalorder %s139, %s141
      %p145 = scmp.eq.s32.totalorder %s27, 0
      %p146 = por %p144, %p145
      %p147 = scmp.ne.s32.totalorder %s139, %s141
      %p148 = scmp.eq.s32.totalorder %s32, 3
      %p149 = por %p147, %p148
      %p150 = scmp.ne.s32.totalorder %s141, %s142
      %p151 = scmp.eq.s32.totalorder %s32, 0
      %p152 = por %p150, %p151
      %p153 = scmp.ne.s32.totalorder %s141, %s142
      %p154 = scmp.eq.s32.totalorder %s33, 3
      %p155 = por %p153, %p154
      %p157 = scmp.ne.s32.totalorder %s142, %s156
      %p158 = scmp.eq.s32.totalorder %s33, 0
      %p159 = por %p157, %p158
      %s161 = sadd.s32 %s160, 1
      %p164 = scmp.eq.s32.totalorder %s27, 3
      %p165 = scmp.ne.s32.totalorder %s160, %s162
      %p166 = scmp.eq.s32.totalorder %s27, 0
      %p167 = por %p165, %p166
      %p168 = scmp.ne.s32.totalorder %s160, %s162
      %p169 = scmp.eq.s32.totalorder %s32, 3
      %p170 = por %p168, %p169
      %p171 = scmp.ne.s32.totalorder %s162, %s163
      %p172 = scmp.eq.s32.totalorder %s32, 0
      %p173 = por %p171, %p172
      %p174 = scmp.ne.s32.totalorder %s162, %s163
      %p175 = scmp.eq.s32.totalorder %s33, 3
      %p176 = por %p174, %p175
      %p178 = scmp.ne.s32.totalorder %s163, %s177
      %p179 = scmp.eq.s32.totalorder %s33, 0
      %p180 = por %p178, %p179
      %s182 = sadd.s32 %s181, 1
      %p185 = scmp.eq.s32.totalorder %s27, 3
      %p186 = scmp.ne.s32.totalorder %s181, %s183
      %p187 = scmp.eq.s32.totalorder %s27, 0
      %p188 = por %p186, %p187
      %p189 = scmp.ne.s32.totalorder %s181, %s183
      %p190 = scmp.eq.s32.totalorder %s32, 3
      %p191 = por %p189, %p190
      %p192 = scmp.ne.s32.totalorder %s183, %s184
      %p193 = scmp.eq.s32.totalorder %s32, 0
      %p194 = por %p192, %p193
      %p195 = scmp.ne.s32.totalorder %s183, %s184
      %p196 = scmp.eq.s32.totalorder %s33, 3
      %p197 = por %p195, %p196
      %p199 = scmp.ne.s32.totalorder %s184, %s198
      %p200 = scmp.eq.s32.totalorder %s33, 0
      %p201 = por %p199, %p200
      %s203 = sadd.s32 %s202, 1
      %p206 = scmp.eq.s32.totalorder %s27, 3
      %p207 = scmp.ne.s32.totalorder %s202, %s204
      %p208 = scmp.eq.s32.totalorder %s27, 0
      %p209 = por %p207, %p208
      %p210 = scmp.ne.s32.totalorder %s202, %s204
      %p211 = scmp.eq.s32.totalorder %s32, 3
      %p212 = por %p210, %p211
      %p213 = scmp.ne.s32.totalorder %s204, %s205
      %p214 = scmp.eq.s32.totalorder %s32, 0
      %p215 = por %p213, %p214
      %p216 = scmp.ne.s32.totalorder %s204, %s205
      %p217 = scmp.eq.s32.totalorder %s33, 3
      %p218 = por %p216, %p217
      %p220 = scmp.ne.s32.totalorder %s205, %s219
      %p221 = scmp.eq.s32.totalorder %s33, 0
      %p222 = por %p220, %p221
      %s223 = ssub.s32 %s27, %s34
      %p224 = scmp.eq.s32.totalorder %s223, 0
      %s226 = sadd.s32 %s225, 1
      %s227 = scalar_select %p224, %s225, %s226
      %p230 = pneg %p224
      %p231 = scmp.eq.s32.totalorder %s27, 3
      %p232 = por %p230, %p231
      %p233 = scmp.ne.s32.totalorder %s225, %s228
      %p234 = scmp.eq.s32.totalorder %s27, 0
      %p235 = por %p233, %p234
      %p236 = scmp.ne.s32.totalorder %s225, %s228
      %p237 = scmp.eq.s32.totalorder %s32, 3
      %p238 = por %p236, %p237
      %p239 = scmp.ne.s32.totalorder %s228, %s229
      %p240 = scmp.eq.s32.totalorder %s32, 0
      %p241 = por %p239, %p240
      %p242 = scmp.ne.s32.totalorder %s228, %s229
      %p243 = scmp.eq.s32.totalorder %s33, 3
      %p244 = por %p242, %p243
      %p246 = scmp.ne.s32.totalorder %s229, %s245
      %p247 = scmp.eq.s32.totalorder %s33, 0
      %p248 = por %p246, %p247
      %p249 = scmp.le.s32.totalorder 1, %s27
      %p250 = scmp.lt.s32.totalorder %s27, 5
      %p251 = pnand %p249, %p250
      %p252 = pneg %p251
      // Predicated region
      $region9: #{tpu_custom_call.1} parent=5 // pred_check
        _
      $region10: #{tpu_custom_call.1} parent=5 // pred_check_branch
        %254 = sbr.rel (%p251) target = $region12
      $region11: #{tpu_custom_call.1} parent=5 // pred_region
        %s255 = ssub.s32 %s27, 1
        // Predicated region
        $region13: #{tpu_custom_call.1} parent=11 // pred_check
          %p256 = pneg %p152
        $region14: #{tpu_custom_call.1} parent=11 // pred_check_branch
          %258 = sbr.rel (%p256) target = $region16
        $region15: #{tpu_custom_call.1} parent=11 // pred_region
          %260 = vsyncadd [#allocation10], 0
          %s261 = sshll.u32 %s4, 4
          %s262 = int_to_ptr.hbm [resolvable:$true] %s261
          %s263 = sshll.u32 [#allocation11], 4
          %s264 = int_to_ptr.vmem [resolvable:$true] %s263
          %269 = dma.hbm_to_vmem [thread:$0]  %s262, 4096, %s264, [#allocation10], 256, 256, 16
        $region16: #{tpu_custom_call.1} parent=11 // pred_fallthru
          _
        // Predicated region
        $region17: #{tpu_custom_call.1} parent=11 // pred_check
          %p270 = pneg %p173
        $region18: #{tpu_custom_call.1} parent=11 // pred_check_branch
          %272 = sbr.rel (%p270) target = $region20
        $region19: #{tpu_custom_call.1} parent=11 // pred_region
          _
        $region20: #{tpu_custom_call.1} parent=11 // pred_fallthru
          _
        // Predicated region
        $region21: #{tpu_custom_call.1} parent=11 // pred_check
          %p273 = pneg %p194
        $region22: #{tpu_custom_call.1} parent=11 // pred_check_branch
          %275 = sbr.rel (%p273) target = $region24
        $region23: #{tpu_custom_call.1} parent=11 // pred_region
          _
        $region24: #{tpu_custom_call.1} parent=11 // pred_fallthru
          _
        // Predicated region
        $region25: #{tpu_custom_call.1} parent=11 // pred_check
          %p276 = pneg %p215
        $region26: #{tpu_custom_call.1} parent=11 // pred_check_branch
          %278 = sbr.rel (%p276) target = $region28
        $region27: #{tpu_custom_call.1} parent=11 // pred_region
          _
        $region28: #{tpu_custom_call.1} parent=11 // pred_fallthru
          _
      $region12: #{tpu_custom_call.1} parent=5 // pred_fallthru
        _
      %p279 = scmp.lt.s32.totalorder %s27, 4
      // Predicated region
      $region29: #{tpu_custom_call.1} parent=5 // pred_check
        %p280 = pneg %p279
      $region30: #{tpu_custom_call.1} parent=5 // pred_check_branch
        %282 = sbr.rel (%p280) target = $region32
      $region31: #{tpu_custom_call.1} parent=5 // pred_region
        // Predicated region
        $region33: #{tpu_custom_call.1} parent=31 // pred_check
          %p283 = pneg %p47
        $region34: #{tpu_custom_call.1} parent=31 // pred_check_branch
          %285 = sbr.rel (%p283) target = $region36
        $region35: #{tpu_custom_call.1} parent=31 // pred_region
          %s286 = sand.u32 %s37, 1
          %s287 = scalar_lea.sflag [#allocation4], %s286
          %s288 = sand.u32 %s37, 1
          %s289 = smul.addr %s288, 8
          %s290 = scalar_lea.vmem [#allocation3], %s289
          %292 = vsyncadd %s287, 0
          %s293 = smul.addr %s27, 8
          %s294 = scalar_lea.hbm %s0, %s293
          %s296 = sshll.u32 %s294, 4
          %s297 = int_to_ptr.hbm [resolvable:$true] %s296
          %s298 = sshll.u32 %s290, 4
          %s299 = int_to_ptr.vmem [resolvable:$true] %s298
          %301 = dma.hbm_to_vmem [thread:$0]  %s297, 128, %s299, %s287
        $region36: #{tpu_custom_call.1} parent=31 // pred_fallthru
          _
        // Predicated region
        $region37: #{tpu_custom_call.1} parent=31 // pred_check
          %p302 = pneg %p73
        $region38: #{tpu_custom_call.1} parent=31 // pred_check_branch
          %304 = sbr.rel (%p302) target = $region40
        $region39: #{tpu_custom_call.1} parent=31 // pred_region
          %s305 = sand.u32 %s27, 1
          %s306 = scalar_lea.sflag [#allocation7], %s305
          %s307 = sand.u32 %s63, 1
          %s308 = smul.addr %s307, 8
          %s309 = scalar_lea.vmem [#allocation6], %s308
          %311 = vsyncadd %s306, 0
          %s312 = smul.addr %s27, 8
          %s313 = scalar_lea.hbm %s1, %s312
          %s315 = sshll.u32 %s313, 4
          %s316 = int_to_ptr.hbm [resolvable:$true] %s315
          %s317 = sshll.u32 %s309, 4
          %s318 = int_to_ptr.vmem [resolvable:$true] %s317
          %320 = dma.hbm_to_vmem [thread:$0]  %s316, 128, %s318, %s306
        $region40: #{tpu_custom_call.1} parent=31 // pred_fallthru
          _
        // Predicated region
        $region41: #{tpu_custom_call.1} parent=31 // pred_check
          %p321 = pneg %p99
        $region42: #{tpu_custom_call.1} parent=31 // pred_check_branch
          %323 = sbr.rel (%p321) target = $region44
        $region43: #{tpu_custom_call.1} parent=31 // pred_region
          %s324 = sand.u32 %s27, 1
          %s325 = scalar_lea.sflag [#allocation7], %s324
          %s326 = sand.u32 %s89, 1
          %s327 = smul.addr %s326, 8
          %s328 = scalar_lea.vmem [#allocation8], %s327
          %330 = vsyncadd %s325, 0
          %s331 = smul.addr %s27, 8
          %s332 = scalar_lea.hbm %s2, %s331
          %s334 = sshll.u32 %s332, 4
          %s335 = int_to_ptr.hbm [resolvable:$true] %s334
          %s336 = sshll.u32 %s328, 4
          %s337 = int_to_ptr.vmem [resolvable:$true] %s336
          %339 = dma.hbm_to_vmem [thread:$0]  %s335, 128, %s337, %s325
        $region44: #{tpu_custom_call.1} parent=31 // pred_fallthru
          _
        // Predicated region
        $region45: #{tpu_custom_call.1} parent=31 // pred_check
          %p340 = pneg %p125
        $region46: #{tpu_custom_call.1} parent=31 // pred_check_branch
          %342 = sbr.rel (%p340) target = $region48
        $region47: #{tpu_custom_call.1} parent=31 // pred_region
          %s343 = sand.u32 %s27, 1
          %s344 = scalar_lea.sflag [#allocation10], %s343
          %s345 = sand.u32 %s115, 1
          %s346 = smul.addr %s345, 2
          %s347 = scalar_lea.vmem [#allocation9], %s346
          %349 = vsyncadd %s344, 0
          %s350 = smul.addr %s27, 2
          %s351 = scalar_lea.hbm %s3, %s350
          %s353 = sshll.u32 %s351, 4
          %s354 = int_to_ptr.hbm [resolvable:$true] %s353
          %s355 = sshll.u32 %s347, 4
          %s356 = int_to_ptr.vmem [resolvable:$true] %s355
          %358 = dma.hbm_to_vmem [thread:$0]  %s354, 32, %s356, %s344
        $region48: #{tpu_custom_call.1} parent=31 // pred_fallthru
          _
      $region32: #{tpu_custom_call.1} parent=5 // pred_fallthru
        _
      %p359 = scmp.le.s32.totalorder 1, %s27
      %p360 = scmp.lt.s32.totalorder %s27, 5
      %p361 = pnand %p359, %p360
      %p362 = pneg %p361
      // Predicated region
      $region49: #{tpu_custom_call.1} parent=5 // pred_check
        _
      $region50: #{tpu_custom_call.1} parent=5 // pred_check_branch
        %364 = sbr.rel (%p361) target = $region52
      $region51: #{tpu_custom_call.1} parent=5 // pred_region
        %s365 = ssub.s32 %s27, 1
        %s366 = sand.u32 %s40, 1
        %s367 = scalar_lea.sflag [#allocation4], %s366
        %s368 = sand.u32 %s40, 1
        %s369 = smul.addr %s368, 8
        %s370 = scalar_lea.vmem [#allocation3], %s369
        // Predicated region
        $region53: #{tpu_custom_call.1} parent=51 // pred_check
          %p371 = pneg %p53
        $region54: #{tpu_custom_call.1} parent=51 // pred_check_branch
          %373 = sbr.rel (%p371) target = $region56
        $region55: #{tpu_custom_call.1} parent=51 // pred_region
          %375 = dma.done %s367, 128
        $region56: #{tpu_custom_call.1} parent=51 // pred_fallthru
          _
        %s376 = sand.u32 %s32, 1
        %s377 = scalar_lea.sflag [#allocation7], %s376
        %s378 = sand.u32 %s66, 1
        %s379 = smul.addr %s378, 8
        %s380 = scalar_lea.vmem [#allocation6], %s379
        // Predicated region
        $region57: #{tpu_custom_call.1} parent=51 // pred_check
          %p381 = pneg %p79
        $region58: #{tpu_custom_call.1} parent=51 // pred_check_branch
          %383 = sbr.rel (%p381) target = $region60
        $region59: #{tpu_custom_call.1} parent=51 // pred_region
          %385 = dma.done %s377, 128
        $region60: #{tpu_custom_call.1} parent=51 // pred_fallthru
          _
        %s386 = sand.u32 %s32, 1
        %s387 = scalar_lea.sflag [#allocation7], %s386
        %s388 = sand.u32 %s92, 1
        %s389 = smul.addr %s388, 8
        %s390 = scalar_lea.vmem [#allocation8], %s389
        // Predicated region
        $region61: #{tpu_custom_call.1} parent=51 // pred_check
          %p391 = pneg %p105
        $region62: #{tpu_custom_call.1} parent=51 // pred_check_branch
          %393 = sbr.rel (%p391) target = $region64
        $region63: #{tpu_custom_call.1} parent=51 // pred_region
          %395 = dma.done %s387, 128
        $region64: #{tpu_custom_call.1} parent=51 // pred_fallthru
          _
        %s396 = sand.u32 %s32, 1
        %s397 = scalar_lea.sflag [#allocation10], %s396
        %s398 = sand.u32 %s118, 1
        %s399 = smul.addr %s398, 2
        %s400 = scalar_lea.vmem [#allocation9], %s399
        // Predicated region
        $region65: #{tpu_custom_call.1} parent=51 // pred_check
          %p401 = pneg %p131
        $region66: #{tpu_custom_call.1} parent=51 // pred_check_branch
          %403 = sbr.rel (%p401) target = $region68
        $region67: #{tpu_custom_call.1} parent=51 // pred_region
          %405 = dma.done %s397, 32
        $region68: #{tpu_custom_call.1} parent=51 // pred_fallthru
          _
        // Predicated region
        $region69: #{tpu_custom_call.1} parent=51 // pred_check
          %p406 = pneg %p152
        $region70: #{tpu_custom_call.1} parent=51 // pred_check_branch
          %408 = sbr.rel (%p406) target = $region72
        $region71: #{tpu_custom_call.1} parent=51 // pred_region
          %410 = dma.done [#allocation10], 4096
        $region72: #{tpu_custom_call.1} parent=51 // pred_fallthru
          _
        %s411 = sand.u32 %s40, 1
        %s412 = scalar_lea.sflag [#allocation4], %s411
        %s413 = sand.u32 %s40, 1
        %s414 = smul.addr %s413, 8
        %s415 = scalar_lea.vmem [#allocation3], %s414
        %p416 = pneg %p53
        %p417 = pneg %p50
        %s418 = sand.u32 %s32, 1
        %s419 = scalar_lea.sflag [#allocation7], %s418
        %s420 = sand.u32 %s66, 1
        %s421 = smul.addr %s420, 8
        %s422 = scalar_lea.vmem [#allocation6], %s421
        %p423 = pneg %p79
        %p424 = pneg %p76
        %s425 = sand.u32 %s32, 1
        %s426 = scalar_lea.sflag [#allocation7], %s425
        %s427 = sand.u32 %s92, 1
        %s428 = smul.addr %s427, 8
        %s429 = scalar_lea.vmem [#allocation8], %s428
        %p430 = pneg %p105
        %p431 = pneg %p102
        %s432 = sand.u32 %s32, 1
        %s433 = scalar_lea.sflag [#allocation10], %s432
        %s434 = sand.u32 %s118, 1
        %s435 = smul.addr %s434, 2
        %s436 = scalar_lea.vmem [#allocation9], %s435
        %p437 = pneg %p131
        %p438 = pneg %p128
        %p439 = pneg %p152
        %p440 = pneg %p149
        %p441 = pneg %p173
        %p442 = pneg %p170
        %p443 = pneg %p194
        %p444 = pneg %p191
        %p445 = pneg %p215
        %p446 = pneg %p212
        %p447 = pneg %p241
        %p448 = pneg %p238
        %s449 = sand.u32 %s228, 1
        %s450 = scalar_lea.sflag [#allocation5], %s449
        %s451 = sand.u32 %s228, 1
        %s452 = smul.addr %s451, 2
        %s453 = scalar_lea.vmem [#allocation12], %s452
        %v454 = vld [vmem:[%s370] sm:$0xff]
        %v455 = vld [vmem:[%s380] sm:$0xff]
        %v456 = vld [vmem:[%s390] sm:$0xff]
        %v457 = vld [vmem:[#allocation11] sm:$0xff]
        %v458 = vld [vmem:[#allocation11 + $0x8] sm:$0xff]
        %v459 = vld [vmem:[#allocation11 + $0x10] sm:$0xff]
        %v460 = vld [vmem:[#allocation11 + $0x18] sm:$0xff]
        %v461 = vld [vmem:[#allocation11 + $0x20] sm:$0xff]
        %v462 = vld [vmem:[#allocation11 + $0x28] sm:$0xff]
        %v463 = vld [vmem:[#allocation11 + $0x30] sm:$0xff]
        %v464 = vld [vmem:[#allocation11 + $0x38] sm:$0xff]
        %v465 = vld [vmem:[#allocation11 + $0x40] sm:$0xff]
        %v466 = vld [vmem:[#allocation11 + $0x48] sm:$0xff]
        %v467 = vld [vmem:[#allocation11 + $0x50] sm:$0xff]
        %v468 = vld [vmem:[#allocation11 + $0x58] sm:$0xff]
        %v469 = vld [vmem:[#allocation11 + $0x60] sm:$0xff]
        %v470 = vld [vmem:[#allocation11 + $0x68] sm:$0xff]
        %v471 = vld [vmem:[#allocation11 + $0x70] sm:$0xff]
        %v472 = vld [vmem:[#allocation11 + $0x78] sm:$0xff]
        %v473 = vld [vmem:[#allocation11 + $0x80] sm:$0xff]
        %v474 = vld [vmem:[#allocation11 + $0x88] sm:$0xff]
        %v475 = vld [vmem:[#allocation11 + $0x90] sm:$0xff]
        %v476 = vld [vmem:[#allocation11 + $0x98] sm:$0xff]
        %v477 = vld [vmem:[#allocation11 + $0xa0] sm:$0xff]
        %v478 = vld [vmem:[#allocation11 + $0xa8] sm:$0xff]
        %v479 = vld [vmem:[#allocation11 + $0xb0] sm:$0xff]
        %v480 = vld [vmem:[#allocation11 + $0xb8] sm:$0xff]
        %v481 = vld [vmem:[#allocation11 + $0xc0] sm:$0xff]
        %v482 = vld [vmem:[#allocation11 + $0xc8] sm:$0xff]
        %v483 = vld [vmem:[#allocation11 + $0xd0] sm:$0xff]
        %v484 = vld [vmem:[#allocation11 + $0xd8] sm:$0xff]
        %v485 = vld [vmem:[#allocation11 + $0xe0] sm:$0xff]
        %v486 = vld [vmem:[#allocation11 + $0xe8] sm:$0xff]
        %v487 = vld [vmem:[#allocation11 + $0xf0] sm:$0xff]
        %v488 = vld [vmem:[#allocation11 + $0xf8] sm:$0xff]
        %489 = vmatpush.msra.mxu0 %v487
        %490 = vmatpush.msra.mxu0 %v485
        %491 = vmatpush.msra.mxu0 %v483
        %492 = vmatpush.msra.mxu0 %v481
        %493 = vmatpush.msra.mxu0 %v479
        %494 = vmatpush.msra.mxu0 %v477
        %495 = vmatpush.msra.mxu0 %v475
        %496 = vmatpush.msra.mxu0 %v473
        %497 = vmatpush.msra.mxu0 %v471
        %498 = vmatpush.msra.mxu0 %v469
        %499 = vmatpush.msra.mxu0 %v467
        %500 = vmatpush.msra.mxu0 %v465
        %501 = vmatpush.msra.mxu0 %v463
        %502 = vmatpush.msra.mxu0 %v461
        %503 = vmatpush.msra.mxu0 %v459
        %504 = vmatpush.msra.mxu0 %v457
        %505 = vmatmul.f32.gmra.mxu0 %v454
        %v506 = vpop.f32.mrf.mxu0
        %v507 = vadd.f32 0.0, %v506
        %508 = vdwg.mxu0
        %509 = vmatpush.msra.mxu0 %v488
        %510 = vmatpush.msra.mxu0 %v486
        %511 = vmatpush.msra.mxu0 %v484
        %512 = vmatpush.msra.mxu0 %v482
        %513 = vmatpush.msra.mxu0 %v480
        %514 = vmatpush.msra.mxu0 %v478
        %515 = vmatpush.msra.mxu0 %v476
        %516 = vmatpush.msra.mxu0 %v474
        %517 = vmatpush.msra.mxu0 %v472
        %518 = vmatpush.msra.mxu0 %v470
        %519 = vmatpush.msra.mxu0 %v468
        %520 = vmatpush.msra.mxu0 %v466
        %521 = vmatpush.msra.mxu0 %v464
        %522 = vmatpush.msra.mxu0 %v462
        %523 = vmatpush.msra.mxu0 %v460
        %524 = vmatpush.msra.mxu0 %v458
        %525 = vmatmul.f32.gmra.mxu0 %v454
        %v526 = vpop.f32.mrf.mxu0
        %v527 = vadd.f32 0.0, %v526
        %528 = vdwg.mxu0
        %vm529 = vcmask 64512
        %v531 = vsel %vm529, %v455, 0
        %533 = vmatpush.msra.mxu0 0.0
        %534 = vmatpush.msra.mxu0 0.0
        %535 = vmatpush.msra.mxu0 0.0
        %536 = vmatpush.msra.mxu0 0.0
        %537 = vmatpush.msra.mxu0 0.0
        %538 = vmatpush.msra.mxu0 0.0
        %539 = vmatpush.msra.mxu0 0.0
        %540 = vmatpush.msra.mxu0 0.0
        %541 = vmatpush.msra.mxu0 0.0
        %542 = vmatpush.msra.mxu0 0.0
        %543 = vmatpush.msra.mxu0 0.0
        %544 = vmatpush.msra.mxu0 0.0
        %545 = vmatpush.msra.mxu0 0.0
        %546 = vmatpush.msra.mxu0 0.0
        %547 = vmatpush.msra.mxu0 0.0
        %548 = vmatpush.msra.mxu0 %v507
        %549 = vmatmul.f32.gmra.mxu0 %v531
        %v550 = vpop.f32.mrf.mxu0
        %v551 = vadd.f32 0.0, %v550
        %552 = vdwg.mxu0
        %v554 = vsel %vm529, %v456, 0
        %556 = vmatpush.msra.mxu0 0.0
        %557 = vmatpush.msra.mxu0 0.0
        %558 = vmatpush.msra.mxu0 0.0
        %559 = vmatpush.msra.mxu0 0.0
        %560 = vmatpush.msra.mxu0 0.0
        %561 = vmatpush.msra.mxu0 0.0
        %562 = vmatpush.msra.mxu0 0.0
        %563 = vmatpush.msra.mxu0 0.0
        %564 = vmatpush.msra.mxu0 0.0
        %565 = vmatpush.msra.mxu0 0.0
        %566 = vmatpush.msra.mxu0 0.0
        %567 = vmatpush.msra.mxu0 0.0
        %568 = vmatpush.msra.mxu0 0.0
        %569 = vmatpush.msra.mxu0 0.0
        %570 = vmatpush.msra.mxu0 0.0
        %571 = vmatpush.msra.mxu0 %v527
        %572 = vmatmul.f32.gmra.mxu0 %v554
        %v573 = vpop.f32.mrf.mxu0
        %v574 = vadd.f32 0.0, %v573
        %575 = vdwg.mxu0
        %v576 = vld [vmem:[%s400] sm:$0x3]
        %v577 = vld [vmem:[%s5] sm:$0x3]
        %v578 = vperm.slane %v576, 0
        %v579 = vlaneseq
        %v580 = vshrl.u32 %v579, 7
        %582 = vset.pattern.permute.xlu0 %v580
        %583 = vperm.xlu0 %582, %v578
        %v584 = vpop.permute.xlu0 %583
        %v585 = vmul.f32 %v551, %v584
        %v586 = vperm.slane %v577, 0
        %v587 = vadd.f32 %v585, %v586
        %v588 = vmax.f32 %v587, 0.0
        %v589 = vperm.slane %v576, 1
        %v590 = vlaneseq
        %v591 = vshrl.u32 %v590, 7
        %593 = vset.pattern.permute.xlu0 %v591
        %594 = vperm.xlu0 %593, %v589
        %v595 = vpop.permute.xlu0 %594
        %v596 = vmul.f32 %v574, %v595
        %v597 = vperm.slane %v577, 1
        %v598 = vadd.f32 %v596, %v597
        %v599 = vmax.f32 %v598, 0.0
        %v600 = vld [vmem:[%s6] sm:$0x3]
        %v601 = vperm.slane %v600, 0
        %v602 = vmul.f32 %v588, %v601
        %603 = vadd.xlane.f32.xlu0 %v602
        %v604 = vpop.xlane.xlu0 %603
        %v605 = vperm.slane %v600, 1
        %v606 = vmul.f32 %v599, %v605
        %607 = vadd.xlane.f32.xlu0 %v606
        %v608 = vpop.xlane.xlu0 %607
        %v609 = vadd.f32 %v604, %v608
        %s610 = sld [smem:[#allocation2]]
        %v611 = vstv %s610
        %v612 = vadd.f32 %v609, %v611
        %v613 = vmul.f32 %v588, %v612
        %v614 = vrot.slane %v613, 4
        %v615 = vadd.f32 %v613, %v614
        %v616 = vrot.slane %v615, 2
        %v617 = vadd.f32 %v615, %v616
        %v618 = vrot.slane %v617, 1
        %v619 = vadd.f32 %v617, %v618
        %v620 = vmul.f32 %v599, %v612
        %v621 = vrot.slane %v620, 4
        %v622 = vadd.f32 %v620, %v621
        %v623 = vrot.slane %v622, 2
        %v624 = vadd.f32 %v622, %v623
        %v625 = vrot.slane %v624, 1
        %v626 = vadd.f32 %v624, %v625
        %v627 = vlaneseq
        %vm628 = vcmp.ge.s32.totalorder %v627, 0
        %vm629 = vcmp.lt.s32.totalorder %v627, 128
        %vm630 = vmand %vm628, %vm629
        %631 = vst.msk [vmem:[%s453] sm:$0x1] %vm630, %v619
        %632 = vst.msk [vmem:[%s453 + $0x1] sm:$0x1] %vm630, %v626
        %s633 = sand.u32 %s228, 1
        %s634 = scalar_lea.sflag [#allocation5], %s633
        %s635 = sand.u32 %s228, 1
        %s636 = smul.addr %s635, 2
        %s637 = scalar_lea.vmem [#allocation12], %s636
        // Predicated region
        $region73: #{tpu_custom_call.1} parent=51 // pred_check
          %p638 = pneg %p238
        $region74: #{tpu_custom_call.1} parent=51 // pred_check_branch
          %640 = sbr.rel (%p638) target = $region76
        $region75: #{tpu_custom_call.1} parent=51 // pred_region
          %642 = vsyncadd %s634, 0
          %s643 = smul.addr %s32, 2
          %s644 = scalar_lea.hbm %s8, %s643
          %s646 = sshll.u32 %s637, 4
          %s647 = int_to_ptr.vmem [resolvable:$true] %s646
          %s648 = sshll.u32 %s644, 4
          %s649 = int_to_ptr.hbm [resolvable:$true] %s648
          %651 = dma.vmem_to_hbm [thread:$0]  %s647, 32, %s649, %s634
        $region76: #{tpu_custom_call.1} parent=51 // pred_fallthru
          _
      $region52: #{tpu_custom_call.1} parent=5 // pred_fallthru
        _
      %p652 = scmp.le.s32.totalorder 2, %s27
      // Predicated region
      $region77: #{tpu_custom_call.1} parent=5 // pred_check
        %p653 = pneg %p652
      $region78: #{tpu_custom_call.1} parent=5 // pred_check_branch
        %655 = sbr.rel (%p653) target = $region80
      $region79: #{tpu_custom_call.1} parent=5 // pred_region
        %s656 = ssub.s32 %s27, 2
        // Predicated region
        $region81: #{tpu_custom_call.1} parent=79 // pred_check
          %p657 = pneg %p244
        $region82: #{tpu_custom_call.1} parent=79 // pred_check_branch
          %659 = sbr.rel (%p657) target = $region84
        $region83: #{tpu_custom_call.1} parent=79 // pred_region
          %s660 = sand.u32 %s229, 1
          %s661 = scalar_lea.sflag [#allocation5], %s660
          %s662 = sand.u32 %s229, 1
          %s663 = smul.addr %s662, 2
          %s664 = scalar_lea.vmem [#allocation12], %s663
          %666 = dma.done %s661, 32
        $region84: #{tpu_custom_call.1} parent=79 // pred_fallthru
          _
      $region80: #{tpu_custom_call.1} parent=5 // pred_fallthru
        _
    $region6: #{tpu_custom_call.1} parent=1 // loop_footer
      %s31 = sadd.s32 1, %s27
    $region7: #{tpu_custom_call.1} parent=1 // loop_footer_branch
      %26 = sbr.rel target = $region3
    $region8: #{tpu_custom_call.1} parent=1 // loop_exit
      _
    %667 = vsyncpa [#allocation4], 1
    %s668 = scalar_lea.sflag [#allocation4], 1
    %669 = vsyncpa %s668, 1
    %670 = vsyncpa [#allocation7], 1
    %s671 = scalar_lea.sflag [#allocation7], 1
    %672 = vsyncpa %s671, 1
    %673 = vsyncpa [#allocation10], 1
    %s674 = scalar_lea.sflag [#allocation10], 1
    %675 = vsyncpa %s674, 1
    %676 = vsyncpa [#allocation5], 1
    %s677 = scalar_lea.sflag [#allocation5], 1
    %678 = vsyncpa %s677, 1

</llo_original>
